<compile_context>
chip_gen: v7x
topology: tpu7x:2x2x1
jax: 0.10.0
libtpu: 0.0.40
codegen_flags: <defaults>
</compile_context>

<pallas_src>
import jax
import jax.numpy as jnp
from jax.experimental import pallas as pl
from jax.experimental.pallas import tpu as pltpu

_LANES = 128                     # vreg lane width
_IN_FEATURES = 16
_K_DIM = _LANES * _IN_FEATURES   # 2048


def _g_vector_kernel(y_ref, w_ref, b_ref, o_ref):
    # y_ref: (tbr, 2048)  -- 128 batch rows x 16 features packed per slab row
    # w_ref: (2048, 128)  -- block-diagonal weight; column c selects batch row c
    # b_ref: (1,) float32 in SMEM
    # o_ref: (tbr, 128)   -- lane-dense output slab
    acc = jnp.dot(y_ref[...], w_ref[...], preferred_element_type=jnp.float32)
    o_ref[...] = (acc + b_ref[0]).astype(o_ref.dtype)


def make_block_diag_weight(weight, dtype):
    """(1, 16) weight -> (2048, 128) block-diagonal slab.

    Invariant across forwards: precompute once at parameter-load time and pass
    it to g_vector_forward(..., w_bd=...) to keep it off the per-call path.
    """
    w_vec = weight.reshape(_IN_FEATURES).astype(jnp.float32)
    w_bd = (jnp.eye(_LANES, dtype=jnp.float32)[:, None, :]
            * w_vec[None, :, None]).reshape(_K_DIM, _LANES)
    return w_bd.astype(dtype)


def _choose_tiling(n_slab, max_tbr):
    """Pick slab rows per grid step -> (tbr, n_slab_padded).

    Prefers a tbr that (a) divides n_slab (no whole-tensor pad), (b) is
    sublane-aligned (multiple of 8) unless it spans the full array, and
    (c) yields >= 2 grid steps so v7x megacore can use both TensorCores.
    """
    if n_slab <= max_tbr:
        for d in range(n_slab // 2, 7, -1):          # grid >= 2, aligned, no pad
            if n_slab % d == 0 and d % 8 == 0:
                return d, n_slab
        return n_slab, n_slab                        # single full-extent block
    for d in range(max_tbr, 7, -8):                  # aligned divisor, grid >= 2
        if n_slab % d == 0:
            return d, n_slab
    tbr = max_tbr                                    # rare ragged fallback: pad slabs
    return tbr, pl.cdiv(n_slab, tbr) * tbr


def _g_vector_slab_call(y_slab, w_bd, b_smem, tbr, vmem_limit_bytes):
    n_slab = y_slab.shape[0]
    itemsize = jnp.dtype(y_slab.dtype).itemsize
    cost = pl.CostEstimate(
        flops=2 * n_slab * _LANES * _IN_FEATURES,
        transcendentals=0,
        bytes_accessed=(n_slab * _K_DIM * itemsize                       # y
                        + _K_DIM * _LANES * jnp.dtype(w_bd.dtype).itemsize  # W_bd
                        + 4                                              # bias
                        + n_slab * _LANES * itemsize),                   # out
    )
    return pl.pallas_call(
        _g_vector_kernel,
        out_shape=jax.ShapeDtypeStruct((n_slab, _LANES), y_slab.dtype),
        grid_spec=pltpu.PrefetchScalarGridSpec(
            num_scalar_prefetch=0,
            grid=(n_slab // tbr,),
            in_specs=[
                pl.BlockSpec((tbr, _K_DIM), lambda i: (i, 0)),     # y slab tile
                pl.BlockSpec((_K_DIM, _LANES), lambda i: (0, 0)),  # weight (resident)
                pl.BlockSpec(memory_space=pltpu.MemorySpace.SMEM),  # bias scalar
            ],
            out_specs=pl.BlockSpec((tbr, _LANES), lambda i: (i, 0)),
        ),
        compiler_params=pltpu.CompilerParams(
            dimension_semantics=("parallel",),        # shard batch axis across TCs
            vmem_limit_bytes=vmem_limit_bytes,
        ),
        cost_estimate=cost,
    )(y_slab, w_bd, b_smem)


def g_vector_forward(y, weight, bias, *, w_bd=None, block_rows=131072,
                     vmem_limit_bytes=48 * 1024 * 1024):
    """Equivalent of PyTorch g_vector: out = y @ weight.T + bias.

    y: (..., 16), weight: (1, 16), bias: (1,).  Returns (..., 1).
    Pass w_bd=make_block_diag_weight(weight, y.dtype) to hoist the (invariant)
    block-diagonal weight construction out of the per-forward path.
    """
    orig_shape = y.shape
    assert orig_shape[-1] == _IN_FEATURES, "g_vector expects last dim = 16"

    y2d = y.reshape(-1, _IN_FEATURES)                 # (B, 16)
    B = y2d.shape[0]

    if w_bd is None:
        w_bd = make_block_diag_weight(weight, y.dtype)
    b_smem = bias.reshape(1).astype(jnp.float32)

    max_tbr = max(8, (block_rows // _LANES) // 8 * 8)

    # Split into a 128-aligned main body (kernel) and a <128-row tail (plain
    # JAX epilogue) so ragged batches never force a whole-tensor pad of y.
    b_main = (B // _LANES) * _LANES
    tail = None
    if b_main == 0:
        # Tiny batch: pad to a single 128-row slab (negligible) and slice.
        y_main = jnp.pad(y2d, ((0, _LANES - B), (0, 0)))
        b_main_pad = _LANES
    elif b_main == B:
        y_main = y2d                                   # fast path: no pad, no copy
        b_main_pad = b_main
    else:
        # TODO(synk): this prefix slice costs an extra HBM pass of y on ragged
        # batches; avoid it by negotiating a 128-aligned batch with the caller.
        y_main = y2d[:b_main]
        b_main_pad = b_main
        tail = y2d[b_main:]

    n_slab = b_main_pad // _LANES
    tbr, n_slab_pad = _choose_tiling(n_slab, max_tbr)

    # Free row-major reshape (no transpose, no data movement).
    y_slab = y_main.reshape(n_slab, _K_DIM)            # (n_slab, 2048)
    if n_slab_pad != n_slab:
        y_slab = jnp.pad(y_slab, ((0, n_slab_pad - n_slab), (0, 0)))

    out_slab = _g_vector_slab_call(y_slab, w_bd, b_smem, tbr, vmem_limit_bytes)

    # (n_slab_pad, 128) -> (n_slab_pad*128, 1) is a free row-major reshape.
    main_out = out_slab.reshape(n_slab_pad * _LANES, 1)
    main_valid = min(B, b_main_pad)
    if n_slab_pad * _LANES != main_valid:
        main_out = main_out[:main_valid]

    if tail is not None:
        w_col = weight.reshape(_IN_FEATURES, 1).astype(jnp.float32)
        tail_out = (tail.astype(jnp.float32) @ w_col
                    + bias.reshape(1, 1).astype(jnp.float32)).astype(y.dtype)
        out = jnp.concatenate([main_out, tail_out], axis=0)
    else:
        out = main_out

    return out.reshape(orig_shape[:-1] + (1,))


def init_g_vector_params(key, dtype=jnp.float32):
    # Mirrors PyTorch nn.Linear default init: U(-1/sqrt(fan_in), 1/sqrt(fan_in)).
    in_features, out_features = _IN_FEATURES, 1
    k_w, k_b = jax.random.split(key)
    bound = 1.0 / jnp.sqrt(jnp.array(in_features, dtype=jnp.float32))
    weight = jax.random.uniform(
        k_w, (out_features, in_features), dtype=dtype, minval=-bound, maxval=bound
    )
    bias = jax.random.uniform(
        k_b, (out_features,), dtype=dtype, minval=-bound, maxval=bound
    )
    return weight, bias


if __name__ == "__main__":
    key = jax.random.PRNGKey(0)
    k_params, k_input = jax.random.split(key)

    weight, bias = init_g_vector_params(k_params)

    # Small multi-dim batch consistent with the module; 8*16 = 128 rows so the
    # no-pad / no-copy main kernel path is exercised: (8, 16, 16) -> (8, 16, 1).
    y = jax.random.normal(k_input, (8, 16, 16), dtype=jnp.float32)

    # Round inputs/params to bf16-representable f32 so the MXU's default
    # (bf16-input, f32-accumulate) precision is exact and the check is tight.
    y = y.astype(jnp.bfloat16).astype(jnp.float32)
    weight = weight.astype(jnp.bfloat16).astype(jnp.float32)
    bias = bias.astype(jnp.bfloat16).astype(jnp.float32)

    # Precompute the block-diagonal weight once (invariant across forwards).
    w_bd = make_block_diag_weight(weight, y.dtype)

    out = jax.block_until_ready(g_vector_forward(y, weight, bias, w_bd=w_bd))

    # Sanity check against plain-JAX reference.
    ref = y @ weight.T + bias
    assert out.shape == (8, 16, 1), out.shape
    assert jnp.allclose(out, ref, atol=1e-4, rtol=1e-4), float(
        jnp.max(jnp.abs(out - ref))
    )

    print("KERNEL_OK")
</pallas_src>

<mosaic_0001>
module attributes {stable_mosaic.version = 11 : i64} {
  func.func @_g_vector_kernel(%arg0: i32, %arg1: memref<1x2048xf32, #tpu.memory_space<vmem>>, %arg2: memref<2048x128xf32, #tpu.memory_space<vmem>>, %arg3: memref<1xf32, #tpu.memory_space<smem>>, %arg4: memref<1x128xf32, #tpu.memory_space<vmem>>) attributes {dimension_semantics = [#tpu.dimension_semantics<parallel>], iteration_bounds = array<i64: 1>, scalar_prefetch = 0 : i64, scratch_operands = 0 : i64, tpu.core_type = #tpu.core_type<tc>, window_params = [{transform_indices = @transform_0, window_bounds = array<i64: 1, 2048>}, {pipeline_mode = #tpu.pipeline_mode<synchronous>, transform_indices = @transform_1, window_bounds = array<i64: 2048, 128>}, {transform_indices = @transform_2, window_bounds = array<i64: 1>}, {transform_indices = @transform_3, window_bounds = array<i64: 1, 128>}]} {
    %c0 = arith.constant 0 : index
    %c0_0 = arith.constant 0 : index
    %0 = vector.load %arg1[%c0, %c0_0] : memref<1x2048xf32, #tpu.memory_space<vmem>>, vector<1x2048xf32>
    %c0_1 = arith.constant 0 : index
    %c0_2 = arith.constant 0 : index
    %1 = vector.load %arg2[%c0_1, %c0_2] : memref<2048x128xf32, #tpu.memory_space<vmem>>, vector<2048x128xf32>
    %cst = arith.constant dense<0.000000e+00> : vector<1x128xf32>
    %2 = tpu.matmul %0, %1, %cst {dimension_numbers = #tpu.dot_dimension_numbers<[1], [0], [0], [1], [0, 0, 1, 1], [], []>} : vector<1x2048xf32>, vector<2048x128xf32>, vector<1x128xf32> -> vector<1x128xf32>
    %c0_3 = arith.constant 0 : index
    %3 = memref.load %arg3[%c0_3] : memref<1xf32, #tpu.memory_space<smem>>
    %4 = vector.broadcast %3 : f32 to vector<1x128xf32>
    %5 = arith.addf %2, %4 : vector<1x128xf32>
    %c0_4 = arith.constant 0 : index
    %c0_5 = arith.constant 0 : index
    %6 = vector.load %arg4[%c0_4, %c0_5] : memref<1x128xf32, #tpu.memory_space<vmem>>, vector<1x128xf32>
    tpu.vector_store %arg4[%c0_4, %c0_5], %5 {strides = array<i32>} : memref<1x128xf32, #tpu.memory_space<vmem>>, vector<1x128xf32>,
    return
  }
  func.func @transform_0(%arg0: i32) -> (i32, i32) {
    %c0_i32 = arith.constant 0 : i32
    %c0_i32_0 = arith.constant 0 : i32
    return %arg0, %c0_i32 : i32, i32
  }
  func.func @transform_1(%arg0: i32) -> (i32, i32) {
    %c0_i32 = arith.constant 0 : i32
    %c0_i32_0 = arith.constant 0 : i32
    %c0_i32_1 = arith.constant 0 : i32
    return %c0_i32, %c0_i32_0 : i32, i32
  }
  func.func @transform_2(%arg0: i32) -> i32 {
    %c0_i32 = arith.constant 0 : i32
    %c0_i32_0 = arith.constant 0 : i32
    return %c0_i32 : i32
  }
  func.func @transform_3(%arg0: i32) -> (i32, i32) {
    %c0_i32 = arith.constant 0 : i32
    %c0_i32_0 = arith.constant 0 : i32
    return %arg0, %c0_i32 : i32, i32
  }
}

</mosaic_0001>

<llo_original>
// kernel: tpu_custom_call.1
$region0: #{tpu_custom_call.1}
  #allocation0 [shape = 'u32[]', space=smem, size = 0x4, offset = 0x4, fixed_abs, tag = 'smem constant byte address 0x4 - core index']
  #allocation1 [shape = 'u32[144,128]{1,0:T(1,128)}', space=vmem, size = 0x12000, scoped, tag = 'internal scratch']
  #allocation2 [shape = 'f32[1]{0:T(128)S(6)}', space=smem, size = 0x200, scoped, tag = 'scoped memory for tpu_custom_call.1']
  %s0 = inlined_call_operand.hbm [shape: f32[1,2048], index: 0, kind: input, shape index: {}]
  %s1 = inlined_call_operand.hbm [shape: f32[2048,128], index: 1, kind: input, shape index: {}]
  %s2 = inlined_call_operand.<no memory space> [shape: f32[1], index: 2, kind: input, shape index: {}]
  %s3 = inlined_call_operand.hbm [shape: f32[1,128], index: 3, kind: output, shape index: {}]
  %s4 = sld [smem:[#allocation0]]
  $region30: #{tpu_custom_call.1} parent=0
    _
  %s6 = ssub.s32 1, %s4
  %s7 = scalar_select 0, %s6, %s4
  %8 = sst [smem:[#allocation2]] %s2
  $region1: #{tpu_custom_call.1} parent=0
    #allocation3 [shape = 'u8[8192]{0}', space=vmem, size = 0x2000, scoped, tag = 'input window, operand 0, single buffered']
    #allocation4 [shape = 's32[1]{0}', space=sflag, size = 0x4, scoped, tag = 'scoped memory for tpu_custom_call.1']
    #allocation5 [shape = 's32[1]{0}', space=sflag, size = 0x4, scoped, tag = 'scoped memory for tpu_custom_call.1']
    #allocation6 [shape = 'u8[1048576]{0}', space=vmem, size = 0x100000, scoped, tag = 'input window, operand 1, single buffered']
    #allocation7 [shape = 's32[1]{0}', space=sflag, size = 0x4, scoped, tag = 'scoped memory for tpu_custom_call.1']
    #allocation8 [shape = 'u8[512]{0}', space=vmem, size = 0x400, scoped, tag = 'output window, operand 0, single buffered']
    %9 = vsyncpa [#allocation4], 0
    %10 = vsyncpa [#allocation7], 0
    %11 = vsyncpa [#allocation5], 0
    // Predicated region
    $region2: #{tpu_custom_call.1} parent=1 // pred_check
      _
    $region3: #{tpu_custom_call.1} parent=1 // pred_check_branch
      %13 = sbr.rel (0) target = $region5
    $region4: #{tpu_custom_call.1} parent=1 // pred_region
      %s15 = ssub.s32 256, 256
      %16 = vsyncadd [#allocation4], %s15
      %s18 = sshll.u32 [#allocation3], 4
      %s19 = int_to_ptr.vmem [resolvable:$true] %s18
      %21 = dma.hbm_to_vmem [thread:$0]  %s0, 256, %s19, [#allocation4]
    $region5: #{tpu_custom_call.1} parent=1 // pred_fallthru
      _
    // Predicated region
    $region6: #{tpu_custom_call.1} parent=1 // pred_check
      _
    $region7: #{tpu_custom_call.1} parent=1 // pred_check_branch
      %23 = sbr.rel (0) target = $region9
    $region8: #{tpu_custom_call.1} parent=1 // pred_region
      %s25 = ssub.s32 32768, 32768
      %26 = vsyncadd [#allocation7], %s25
      %s27 = sshll.u32 [#allocation6], 4
      %s28 = int_to_ptr.vmem [resolvable:$true] %s27
      %33 = dma.hbm_to_vmem [thread:$0]  %s1, 32768, %s28, [#allocation7], 128, 128, 8
    $region9: #{tpu_custom_call.1} parent=1 // pred_fallthru
      _
    // Predicated region
    $region10: #{tpu_custom_call.1} parent=1 // pred_check
      _
    $region11: #{tpu_custom_call.1} parent=1 // pred_check_branch
      %35 = sbr.rel (0) target = $region13
    $region12: #{tpu_custom_call.1} parent=1 // pred_region
      _
    $region13: #{tpu_custom_call.1} parent=1 // pred_fallthru
      _
    // Predicated region
    $region14: #{tpu_custom_call.1} parent=1 // pred_check
      _
    $region15: #{tpu_custom_call.1} parent=1 // pred_check_branch
      %37 = sbr.rel (0) target = $region17
    $region16: #{tpu_custom_call.1} parent=1 // pred_region
      %38 = dma.done [#allocation4], 256
    $region17: #{tpu_custom_call.1} parent=1 // pred_fallthru
      _
    // Predicated region
    $region18: #{tpu_custom_call.1} parent=1 // pred_check
      _
    $region19: #{tpu_custom_call.1} parent=1 // pred_check_branch
      %40 = sbr.rel (0) target = $region21
    $region20: #{tpu_custom_call.1} parent=1 // pred_region
      %41 = dma.done [#allocation7], 32768
    $region21: #{tpu_custom_call.1} parent=1 // pred_fallthru
      _
    %v42 = vld [vmem:[#allocation3] sm:$0xff]
    %v43 = vld [vmem:[#allocation3 + $0x8] sm:$0xff]
    %v44 = vld [vmem:[#allocation6] sm:$0xff]
    %v45 = vld [vmem:[#allocation6 + $0x8] sm:$0xff]
    %v46 = vld [vmem:[#allocation6 + $0x10] sm:$0xff]
    %v47 = vld [vmem:[#allocation6 + $0x18] sm:$0xff]
    %v48 = vld [vmem:[#allocation6 + $0x20] sm:$0xff]
    %v49 = vld [vmem:[#allocation6 + $0x28] sm:$0xff]
    %v50 = vld [vmem:[#allocation6 + $0x30] sm:$0xff]
    %v51 = vld [vmem:[#allocation6 + $0x38] sm:$0xff]
    %v52 = vld [vmem:[#allocation6 + $0x40] sm:$0xff]
    %v53 = vld [vmem:[#allocation6 + $0x48] sm:$0xff]
    %v54 = vld [vmem:[#allocation6 + $0x50] sm:$0xff]
    %v55 = vld [vmem:[#allocation6 + $0x58] sm:$0xff]
    %v56 = vld [vmem:[#allocation6 + $0x60] sm:$0xff]
    %v57 = vld [vmem:[#allocation6 + $0x68] sm:$0xff]
    %v58 = vld [vmem:[#allocation6 + $0x70] sm:$0xff]
    %v59 = vld [vmem:[#allocation6 + $0x78] sm:$0xff]
    %v60 = vld [vmem:[#allocation6 + $0x80] sm:$0xff]
    %v61 = vld [vmem:[#allocation6 + $0x88] sm:$0xff]
    %v62 = vld [vmem:[#allocation6 + $0x90] sm:$0xff]
    %v63 = vld [vmem:[#allocation6 + $0x98] sm:$0xff]
    %v64 = vld [vmem:[#allocation6 + $0xa0] sm:$0xff]
    %v65 = vld [vmem:[#allocation6 + $0xa8] sm:$0xff]
    %v66 = vld [vmem:[#allocation6 + $0xb0] sm:$0xff]
    %v67 = vld [vmem:[#allocation6 + $0xb8] sm:$0xff]
    %v68 = vld [vmem:[#allocation6 + $0xc0] sm:$0xff]
    %v69 = vld [vmem:[#allocation6 + $0xc8] sm:$0xff]
    %v70 = vld [vmem:[#allocation6 + $0xd0] sm:$0xff]
    %v71 = vld [vmem:[#allocation6 + $0xd8] sm:$0xff]
    %v72 = vld [vmem:[#allocation6 + $0xe0] sm:$0xff]
    %v73 = vld [vmem:[#allocation6 + $0xe8] sm:$0xff]
    %v74 = vld [vmem:[#allocation6 + $0xf0] sm:$0xff]
    %v75 = vld [vmem:[#allocation6 + $0xf8] sm:$0xff]
    %v76 = vld [vmem:[#allocation6 + $0x100] sm:$0xff]
    %v77 = vld [vmem:[#allocation6 + $0x108] sm:$0xff]
    %v78 = vld [vmem:[#allocation6 + $0x110] sm:$0xff]
    %v79 = vld [vmem:[#allocation6 + $0x118] sm:$0xff]
    %v80 = vld [vmem:[#allocation6 + $0x120] sm:$0xff]
    %v81 = vld [vmem:[#allocation6 + $0x128] sm:$0xff]
    %v82 = vld [vmem:[#allocation6 + $0x130] sm:$0xff]
    %v83 = vld [vmem:[#allocation6 + $0x138] sm:$0xff]
    %v84 = vld [vmem:[#allocation6 + $0x140] sm:$0xff]
    %v85 = vld [vmem:[#allocation6 + $0x148] sm:$0xff]
    %v86 = vld [vmem:[#allocation6 + $0x150] sm:$0xff]
    %v87 = vld [vmem:[#allocation6 + $0x158] sm:$0xff]
    %v88 = vld [vmem:[#allocation6 + $0x160] sm:$0xff]
    %v89 = vld [vmem:[#allocation6 + $0x168] sm:$0xff]
    %v90 = vld [vmem:[#allocation6 + $0x170] sm:$0xff]
    %v91 = vld [vmem:[#allocation6 + $0x178] sm:$0xff]
    %v92 = vld [vmem:[#allocation6 + $0x180] sm:$0xff]
    %v93 = vld [vmem:[#allocation6 + $0x188] sm:$0xff]
    %v94 = vld [vmem:[#allocation6 + $0x190] sm:$0xff]
    %v95 = vld [vmem:[#allocation6 + $0x198] sm:$0xff]
    %v96 = vld [vmem:[#allocation6 + $0x1a0] sm:$0xff]
    %v97 = vld [vmem:[#allocation6 + $0x1a8] sm:$0xff]
    %v98 = vld [vmem:[#allocation6 + $0x1b0] sm:$0xff]
    %v99 = vld [vmem:[#allocation6 + $0x1b8] sm:$0xff]
    %v100 = vld [vmem:[#allocation6 + $0x1c0] sm:$0xff]
    %v101 = vld [vmem:[#allocation6 + $0x1c8] sm:$0xff]
    %v102 = vld [vmem:[#allocation6 + $0x1d0] sm:$0xff]
    %v103 = vld [vmem:[#allocation6 + $0x1d8] sm:$0xff]
    %v104 = vld [vmem:[#allocation6 + $0x1e0] sm:$0xff]
    %v105 = vld [vmem:[#allocation6 + $0x1e8] sm:$0xff]
    %v106 = vld [vmem:[#allocation6 + $0x1f0] sm:$0xff]
    %v107 = vld [vmem:[#allocation6 + $0x1f8] sm:$0xff]
    %v108 = vld [vmem:[#allocation6 + $0x200] sm:$0xff]
    %v109 = vld [vmem:[#allocation6 + $0x208] sm:$0xff]
    %v110 = vld [vmem:[#allocation6 + $0x210] sm:$0xff]
    %v111 = vld [vmem:[#allocation6 + $0x218] sm:$0xff]
    %v112 = vld [vmem:[#allocation6 + $0x220] sm:$0xff]
    %v113 = vld [vmem:[#allocation6 + $0x228] sm:$0xff]
    %v114 = vld [vmem:[#allocation6 + $0x230] sm:$0xff]
    %v115 = vld [vmem:[#allocation6 + $0x238] sm:$0xff]
    %v116 = vld [vmem:[#allocation6 + $0x240] sm:$0xff]
    %v117 = vld [vmem:[#allocation6 + $0x248] sm:$0xff]
    %v118 = vld [vmem:[#allocation6 + $0x250] sm:$0xff]
    %v119 = vld [vmem:[#allocation6 + $0x258] sm:$0xff]
    %v120 = vld [vmem:[#allocation6 + $0x260] sm:$0xff]
    %v121 = vld [vmem:[#allocation6 + $0x268] sm:$0xff]
    %v122 = vld [vmem:[#allocation6 + $0x270] sm:$0xff]
    %v123 = vld [vmem:[#allocation6 + $0x278] sm:$0xff]
    %v124 = vld [vmem:[#allocation6 + $0x280] sm:$0xff]
    %v125 = vld [vmem:[#allocation6 + $0x288] sm:$0xff]
    %v126 = vld [vmem:[#allocation6 + $0x290] sm:$0xff]
    %v127 = vld [vmem:[#allocation6 + $0x298] sm:$0xff]
    %v128 = vld [vmem:[#allocation6 + $0x2a0] sm:$0xff]
    %v129 = vld [vmem:[#allocation6 + $0x2a8] sm:$0xff]
    %v130 = vld [vmem:[#allocation6 + $0x2b0] sm:$0xff]
    %v131 = vld [vmem:[#allocation6 + $0x2b8] sm:$0xff]
    %v132 = vld [vmem:[#allocation6 + $0x2c0] sm:$0xff]
    %v133 = vld [vmem:[#allocation6 + $0x2c8] sm:$0xff]
    %v134 = vld [vmem:[#allocation6 + $0x2d0] sm:$0xff]
    %v135 = vld [vmem:[#allocation6 + $0x2d8] sm:$0xff]
    %v136 = vld [vmem:[#allocation6 + $0x2e0] sm:$0xff]
    %v137 = vld [vmem:[#allocation6 + $0x2e8] sm:$0xff]
    %v138 = vld [vmem:[#allocation6 + $0x2f0] sm:$0xff]
    %v139 = vld [vmem:[#allocation6 + $0x2f8] sm:$0xff]
    %v140 = vld [vmem:[#allocation6 + $0x300] sm:$0xff]
    %v141 = vld [vmem:[#allocation6 + $0x308] sm:$0xff]
    %v142 = vld [vmem:[#allocation6 + $0x310] sm:$0xff]
    %v143 = vld [vmem:[#allocation6 + $0x318] sm:$0xff]
    %v144 = vld [vmem:[#allocation6 + $0x320] sm:$0xff]
    %v145 = vld [vmem:[#allocation6 + $0x328] sm:$0xff]
    %v146 = vld [vmem:[#allocation6 + $0x330] sm:$0xff]
    %v147 = vld [vmem:[#allocation6 + $0x338] sm:$0xff]
    %v148 = vld [vmem:[#allocation6 + $0x340] sm:$0xff]
    %v149 = vld [vmem:[#allocation6 + $0x348] sm:$0xff]
    %v150 = vld [vmem:[#allocation6 + $0x350] sm:$0xff]
    %v151 = vld [vmem:[#allocation6 + $0x358] sm:$0xff]
    %v152 = vld [vmem:[#allocation6 + $0x360] sm:$0xff]
    %v153 = vld [vmem:[#allocation6 + $0x368] sm:$0xff]
    %v154 = vld [vmem:[#allocation6 + $0x370] sm:$0xff]
    %v155 = vld [vmem:[#allocation6 + $0x378] sm:$0xff]
    %v156 = vld [vmem:[#allocation6 + $0x380] sm:$0xff]
    %v157 = vld [vmem:[#allocation6 + $0x388] sm:$0xff]
    %v158 = vld [vmem:[#allocation6 + $0x390] sm:$0xff]
    %v159 = vld [vmem:[#allocation6 + $0x398] sm:$0xff]
    %v160 = vld [vmem:[#allocation6 + $0x3a0] sm:$0xff]
    %v161 = vld [vmem:[#allocation6 + $0x3a8] sm:$0xff]
    %v162 = vld [vmem:[#allocation6 + $0x3b0] sm:$0xff]
    %v163 = vld [vmem:[#allocation6 + $0x3b8] sm:$0xff]
    %v164 = vld [vmem:[#allocation6 + $0x3c0] sm:$0xff]
    %v165 = vld [vmem:[#allocation6 + $0x3c8] sm:$0xff]
    %v166 = vld [vmem:[#allocation6 + $0x3d0] sm:$0xff]
    %v167 = vld [vmem:[#allocation6 + $0x3d8] sm:$0xff]
    %v168 = vld [vmem:[#allocation6 + $0x3e0] sm:$0xff]
    %v169 = vld [vmem:[#allocation6 + $0x3e8] sm:$0xff]
    %v170 = vld [vmem:[#allocation6 + $0x3f0] sm:$0xff]
    %v171 = vld [vmem:[#allocation6 + $0x3f8] sm:$0xff]
    %v172 = vld [vmem:[#allocation6 + $0x400] sm:$0xff]
    %v173 = vld [vmem:[#allocation6 + $0x408] sm:$0xff]
    %v174 = vld [vmem:[#allocation6 + $0x410] sm:$0xff]
    %v175 = vld [vmem:[#allocation6 + $0x418] sm:$0xff]
    %v176 = vld [vmem:[#allocation6 + $0x420] sm:$0xff]
    %v177 = vld [vmem:[#allocation6 + $0x428] sm:$0xff]
    %v178 = vld [vmem:[#allocation6 + $0x430] sm:$0xff]
    %v179 = vld [vmem:[#allocation6 + $0x438] sm:$0xff]
    %v180 = vld [vmem:[#allocation6 + $0x440] sm:$0xff]
    %v181 = vld [vmem:[#allocation6 + $0x448] sm:$0xff]
    %v182 = vld [vmem:[#allocation6 + $0x450] sm:$0xff]
    %v183 = vld [vmem:[#allocation6 + $0x458] sm:$0xff]
    %v184 = vld [vmem:[#allocation6 + $0x460] sm:$0xff]
    %v185 = vld [vmem:[#allocation6 + $0x468] sm:$0xff]
    %v186 = vld [vmem:[#allocation6 + $0x470] sm:$0xff]
    %v187 = vld [vmem:[#allocation6 + $0x478] sm:$0xff]
    %v188 = vld [vmem:[#allocation6 + $0x480] sm:$0xff]
    %v189 = vld [vmem:[#allocation6 + $0x488] sm:$0xff]
    %v190 = vld [vmem:[#allocation6 + $0x490] sm:$0xff]
    %v191 = vld [vmem:[#allocation6 + $0x498] sm:$0xff]
    %v192 = vld [vmem:[#allocation6 + $0x4a0] sm:$0xff]
    %v193 = vld [vmem:[#allocation6 + $0x4a8] sm:$0xff]
    %v194 = vld [vmem:[#allocation6 + $0x4b0] sm:$0xff]
    %v195 = vld [vmem:[#allocation6 + $0x4b8] sm:$0xff]
    %v196 = vld [vmem:[#allocation6 + $0x4c0] sm:$0xff]
    %v197 = vld [vmem:[#allocation6 + $0x4c8] sm:$0xff]
    %v198 = vld [vmem:[#allocation6 + $0x4d0] sm:$0xff]
    %v199 = vld [vmem:[#allocation6 + $0x4d8] sm:$0xff]
    %v200 = vld [vmem:[#allocation6 + $0x4e0] sm:$0xff]
    %v201 = vld [vmem:[#allocation6 + $0x4e8] sm:$0xff]
    %v202 = vld [vmem:[#allocation6 + $0x4f0] sm:$0xff]
    %v203 = vld [vmem:[#allocation6 + $0x4f8] sm:$0xff]
    %v204 = vld [vmem:[#allocation6 + $0x500] sm:$0xff]
    %v205 = vld [vmem:[#allocation6 + $0x508] sm:$0xff]
    %v206 = vld [vmem:[#allocation6 + $0x510] sm:$0xff]
    %v207 = vld [vmem:[#allocation6 + $0x518] sm:$0xff]
    %v208 = vld [vmem:[#allocation6 + $0x520] sm:$0xff]
    %v209 = vld [vmem:[#allocation6 + $0x528] sm:$0xff]
    %v210 = vld [vmem:[#allocation6 + $0x530] sm:$0xff]
    %v211 = vld [vmem:[#allocation6 + $0x538] sm:$0xff]
    %v212 = vld [vmem:[#allocation6 + $0x540] sm:$0xff]
    %v213 = vld [vmem:[#allocation6 + $0x548] sm:$0xff]
    %v214 = vld [vmem:[#allocation6 + $0x550] sm:$0xff]
    %v215 = vld [vmem:[#allocation6 + $0x558] sm:$0xff]
    %v216 = vld [vmem:[#allocation6 + $0x560] sm:$0xff]
    %v217 = vld [vmem:[#allocation6 + $0x568] sm:$0xff]
    %v218 = vld [vmem:[#allocation6 + $0x570] sm:$0xff]
    %v219 = vld [vmem:[#allocation6 + $0x578] sm:$0xff]
    %v220 = vld [vmem:[#allocation6 + $0x580] sm:$0xff]
    %v221 = vld [vmem:[#allocation6 + $0x588] sm:$0xff]
    %v222 = vld [vmem:[#allocation6 + $0x590] sm:$0xff]
    %v223 = vld [vmem:[#allocation6 + $0x598] sm:$0xff]
    %v224 = vld [vmem:[#allocation6 + $0x5a0] sm:$0xff]
    %v225 = vld [vmem:[#allocation6 + $0x5a8] sm:$0xff]
    %v226 = vld [vmem:[#allocation6 + $0x5b0] sm:$0xff]
    %v227 = vld [vmem:[#allocation6 + $0x5b8] sm:$0xff]
    %v228 = vld [vmem:[#allocation6 + $0x5c0] sm:$0xff]
    %v229 = vld [vmem:[#allocation6 + $0x5c8] sm:$0xff]
    %v230 = vld [vmem:[#allocation6 + $0x5d0] sm:$0xff]
    %v231 = vld [vmem:[#allocation6 + $0x5d8] sm:$0xff]
    %v232 = vld [vmem:[#allocation6 + $0x5e0] sm:$0xff]
    %v233 = vld [vmem:[#allocation6 + $0x5e8] sm:$0xff]
    %v234 = vld [vmem:[#allocation6 + $0x5f0] sm:$0xff]
    %v235 = vld [vmem:[#allocation6 + $0x5f8] sm:$0xff]
    %v236 = vld [vmem:[#allocation6 + $0x600] sm:$0xff]
    %v237 = vld [vmem:[#allocation6 + $0x608] sm:$0xff]
    %v238 = vld [vmem:[#allocation6 + $0x610] sm:$0xff]
    %v239 = vld [vmem:[#allocation6 + $0x618] sm:$0xff]
    %v240 = vld [vmem:[#allocation6 + $0x620] sm:$0xff]
    %v241 = vld [vmem:[#allocation6 + $0x628] sm:$0xff]
    %v242 = vld [vmem:[#allocation6 + $0x630] sm:$0xff]
    %v243 = vld [vmem:[#allocation6 + $0x638] sm:$0xff]
    %v244 = vld [vmem:[#allocation6 + $0x640] sm:$0xff]
    %v245 = vld [vmem:[#allocation6 + $0x648] sm:$0xff]
    %v246 = vld [vmem:[#allocation6 + $0x650] sm:$0xff]
    %v247 = vld [vmem:[#allocation6 + $0x658] sm:$0xff]
    %v248 = vld [vmem:[#allocation6 + $0x660] sm:$0xff]
    %v249 = vld [vmem:[#allocation6 + $0x668] sm:$0xff]
    %v250 = vld [vmem:[#allocation6 + $0x670] sm:$0xff]
    %v251 = vld [vmem:[#allocation6 + $0x678] sm:$0xff]
    %v252 = vld [vmem:[#allocation6 + $0x680] sm:$0xff]
    %v253 = vld [vmem:[#allocation6 + $0x688] sm:$0xff]
    %v254 = vld [vmem:[#allocation6 + $0x690] sm:$0xff]
    %v255 = vld [vmem:[#allocation6 + $0x698] sm:$0xff]
    %v256 = vld [vmem:[#allocation6 + $0x6a0] sm:$0xff]
    %v257 = vld [vmem:[#allocation6 + $0x6a8] sm:$0xff]
    %v258 = vld [vmem:[#allocation6 + $0x6b0] sm:$0xff]
    %v259 = vld [vmem:[#allocation6 + $0x6b8] sm:$0xff]
    %v260 = vld [vmem:[#allocation6 + $0x6c0] sm:$0xff]
    %v261 = vld [vmem:[#allocation6 + $0x6c8] sm:$0xff]
    %v262 = vld [vmem:[#allocation6 + $0x6d0] sm:$0xff]
    %v263 = vld [vmem:[#allocation6 + $0x6d8] sm:$0xff]
    %v264 = vld [vmem:[#allocation6 + $0x6e0] sm:$0xff]
    %v265 = vld [vmem:[#allocation6 + $0x6e8] sm:$0xff]
    %v266 = vld [vmem:[#allocation6 + $0x6f0] sm:$0xff]
    %v267 = vld [vmem:[#allocation6 + $0x6f8] sm:$0xff]
    %v268 = vld [vmem:[#allocation6 + $0x700] sm:$0xff]
    %v269 = vld [vmem:[#allocation6 + $0x708] sm:$0xff]
    %v270 = vld [vmem:[#allocation6 + $0x710] sm:$0xff]
    %v271 = vld [vmem:[#allocation6 + $0x718] sm:$0xff]
    %v272 = vld [vmem:[#allocation6 + $0x720] sm:$0xff]
    %v273 = vld [vmem:[#allocation6 + $0x728] sm:$0xff]
    %v274 = vld [vmem:[#allocation6 + $0x730] sm:$0xff]
    %v275 = vld [vmem:[#allocation6 + $0x738] sm:$0xff]
    %v276 = vld [vmem:[#allocation6 + $0x740] sm:$0xff]
    %v277 = vld [vmem:[#allocation6 + $0x748] sm:$0xff]
    %v278 = vld [vmem:[#allocation6 + $0x750] sm:$0xff]
    %v279 = vld [vmem:[#allocation6 + $0x758] sm:$0xff]
    %v280 = vld [vmem:[#allocation6 + $0x760] sm:$0xff]
    %v281 = vld [vmem:[#allocation6 + $0x768] sm:$0xff]
    %v282 = vld [vmem:[#allocation6 + $0x770] sm:$0xff]
    %v283 = vld [vmem:[#allocation6 + $0x778] sm:$0xff]
    %v284 = vld [vmem:[#allocation6 + $0x780] sm:$0xff]
    %v285 = vld [vmem:[#allocation6 + $0x788] sm:$0xff]
    %v286 = vld [vmem:[#allocation6 + $0x790] sm:$0xff]
    %v287 = vld [vmem:[#allocation6 + $0x798] sm:$0xff]
    %v288 = vld [vmem:[#allocation6 + $0x7a0] sm:$0xff]
    %v289 = vld [vmem:[#allocation6 + $0x7a8] sm:$0xff]
    %v290 = vld [vmem:[#allocation6 + $0x7b0] sm:$0xff]
    %v291 = vld [vmem:[#allocation6 + $0x7b8] sm:$0xff]
    %v292 = vld [vmem:[#allocation6 + $0x7c0] sm:$0xff]
    %v293 = vld [vmem:[#allocation6 + $0x7c8] sm:$0xff]
    %v294 = vld [vmem:[#allocation6 + $0x7d0] sm:$0xff]
    %v295 = vld [vmem:[#allocation6 + $0x7d8] sm:$0xff]
    %v296 = vld [vmem:[#allocation6 + $0x7e0] sm:$0xff]
    %v297 = vld [vmem:[#allocation6 + $0x7e8] sm:$0xff]
    %v298 = vld [vmem:[#allocation6 + $0x7f0] sm:$0xff]
    %v299 = vld [vmem:[#allocation6 + $0x7f8] sm:$0xff]
    %s300 = sld [smem:[#allocation2]]
    %v301 = vstv %s300
    %v304 = vlaneseq
    %v305 = vshrl.u32 %v304, 7
    %v306 = vsub.s32 0, %v305
    %v307 = vrot.slane %v42, %v306
    %v308 = vlaneseq
    %v309 = vshrl.u32 %v308, 7
    %v310 = vsub.s32 1, %v309
    %v311 = vrot.slane %v42, %v310
    %v312 = vlaneseq
    %v313 = vshrl.u32 %v312, 7
    %v314 = vsub.s32 2, %v313
    %v315 = vrot.slane %v42, %v314
    %v316 = vlaneseq
    %v317 = vshrl.u32 %v316, 7
    %v318 = vsub.s32 3, %v317
    %v319 = vrot.slane %v42, %v318
    %v320 = vlaneseq
    %v321 = vshrl.u32 %v320, 7
    %v322 = vsub.s32 4, %v321
    %v323 = vrot.slane %v42, %v322
    %v324 = vlaneseq
    %v325 = vshrl.u32 %v324, 7
    %v326 = vsub.s32 5, %v325
    %v327 = vrot.slane %v42, %v326
    %v328 = vlaneseq
    %v329 = vshrl.u32 %v328, 7
    %v330 = vsub.s32 6, %v329
    %v331 = vrot.slane %v42, %v330
    %v332 = vlaneseq
    %v333 = vshrl.u32 %v332, 7
    %v334 = vsub.s32 7, %v333
    %v335 = vrot.slane %v42, %v334
    %v336 = vlaneseq
    %v337 = vshrl.u32 %v336, 7
    %v338 = vsub.s32 0, %v337
    %v339 = vrot.slane %v43, %v338
    %v340 = vlaneseq
    %v341 = vshrl.u32 %v340, 7
    %v342 = vsub.s32 1, %v341
    %v343 = vrot.slane %v43, %v342
    %v344 = vlaneseq
    %v345 = vshrl.u32 %v344, 7
    %v346 = vsub.s32 2, %v345
    %v347 = vrot.slane %v43, %v346
    %v348 = vlaneseq
    %v349 = vshrl.u32 %v348, 7
    %v350 = vsub.s32 3, %v349
    %v351 = vrot.slane %v43, %v350
    %v352 = vlaneseq
    %v353 = vshrl.u32 %v352, 7
    %v354 = vsub.s32 4, %v353
    %v355 = vrot.slane %v43, %v354
    %v356 = vlaneseq
    %v357 = vshrl.u32 %v356, 7
    %v358 = vsub.s32 5, %v357
    %v359 = vrot.slane %v43, %v358
    %v360 = vlaneseq
    %v361 = vshrl.u32 %v360, 7
    %v362 = vsub.s32 6, %v361
    %v363 = vrot.slane %v43, %v362
    %v364 = vlaneseq
    %v365 = vshrl.u32 %v364, 7
    %v366 = vsub.s32 7, %v365
    %v367 = vrot.slane %v43, %v366
    %384 = vmatprep.subr.mxu0 0.0
    %385 = vmatpush1.msra.mxu0 %v44
    %386 = vmatprep.subr.mxu0 0.0
    %387 = vmatpush1.msra.mxu0 %v45
    %388 = vmatprep.subr.mxu0 0.0
    %389 = vmatpush1.msra.mxu0 %v46
    %390 = vmatprep.subr.mxu0 0.0
    %391 = vmatpush1.msra.mxu0 %v47
    %392 = vmatprep.subr.mxu0 0.0
    %393 = vmatpush1.msra.mxu0 %v48
    %394 = vmatprep.subr.mxu0 0.0
    %395 = vmatpush1.msra.mxu0 %v49
    %396 = vmatprep.subr.mxu0 0.0
    %397 = vmatpush1.msra.mxu0 %v50
    %398 = vmatprep.subr.mxu0 0.0
    %399 = vmatpush1.msra.mxu0 %v51
    %400 = vmatprep.subr.mxu0 0.0
    %401 = vmatpush1.msra.mxu0 %v52
    %402 = vmatprep.subr.mxu0 0.0
    %403 = vmatpush1.msra.mxu0 %v53
    %404 = vmatprep.subr.mxu0 0.0
    %405 = vmatpush1.msra.mxu0 %v54
    %406 = vmatprep.subr.mxu0 0.0
    %407 = vmatpush1.msra.mxu0 %v55
    %408 = vmatprep.subr.mxu0 0.0
    %409 = vmatpush1.msra.mxu0 %v56
    %410 = vmatprep.subr.mxu0 0.0
    %411 = vmatpush1.msra.mxu0 %v57
    %412 = vmatprep.subr.mxu0 0.0
    %413 = vmatpush1.msra.mxu0 %v58
    %414 = vmatprep.subr.mxu0 0.0
    %415 = vmatpush1.msra.mxu0 %v59
    %416 = vmatprep.subr.mxu0 0.0
    %417 = vmatpush1.msra.mxu0 %v60
    %418 = vmatprep.subr.mxu0 0.0
    %419 = vmatpush1.msra.mxu0 %v61
    %420 = vmatprep.subr.mxu0 0.0
    %421 = vmatpush1.msra.mxu0 %v62
    %422 = vmatprep.subr.mxu0 0.0
    %423 = vmatpush1.msra.mxu0 %v63
    %424 = vmatprep.subr.mxu0 0.0
    %425 = vmatpush1.msra.mxu0 %v64
    %426 = vmatprep.subr.mxu0 0.0
    %427 = vmatpush1.msra.mxu0 %v65
    %428 = vmatprep.subr.mxu0 0.0
    %429 = vmatpush1.msra.mxu0 %v66
    %430 = vmatprep.subr.mxu0 0.0
    %431 = vmatpush1.msra.mxu0 %v67
    %432 = vmatprep.subr.mxu0 0.0
    %433 = vmatpush1.msra.mxu0 %v68
    %434 = vmatprep.subr.mxu0 0.0
    %435 = vmatpush1.msra.mxu0 %v69
    %436 = vmatprep.subr.mxu0 0.0
    %437 = vmatpush1.msra.mxu0 %v70
    %438 = vmatprep.subr.mxu0 0.0
    %439 = vmatpush1.msra.mxu0 %v71
    %440 = vmatprep.subr.mxu0 0.0
    %441 = vmatpush1.msra.mxu0 %v72
    %442 = vmatprep.subr.mxu0 0.0
    %443 = vmatpush1.msra.mxu0 %v73
    %444 = vmatprep.subr.mxu0 0.0
    %445 = vmatpush1.msra.mxu0 %v74
    %446 = vmatprep.subr.mxu0 0.0
    %447 = vmatpush1.msra.mxu0 %v75
    %448 = vmatprep.mubr.f32.mxu0 %v311
    %449 = vmatmul.mubr.f32.gmra.mrb[0].mxu0 %v307
    %v450 = vpop.f32.mrb[0].mxu0
    %v451 = vadd.f32 %v301, %v450
    %v452 = vpop.f32.mrb[0].mxu0
    %453 = vdwg.mxu0
    %454 = vmatprep.subr.mxu0 0.0
    %455 = vmatpush1.msra.mxu0 %v76
    %456 = vmatprep.subr.mxu0 0.0
    %457 = vmatpush1.msra.mxu0 %v77
    %458 = vmatprep.subr.mxu0 0.0
    %459 = vmatpush1.msra.mxu0 %v78
    %460 = vmatprep.subr.mxu0 0.0
    %461 = vmatpush1.msra.mxu0 %v79
    %462 = vmatprep.subr.mxu0 0.0
    %463 = vmatpush1.msra.mxu0 %v80
    %464 = vmatprep.subr.mxu0 0.0
    %465 = vmatpush1.msra.mxu0 %v81
    %466 = vmatprep.subr.mxu0 0.0
    %467 = vmatpush1.msra.mxu0 %v82
    %468 = vmatprep.subr.mxu0 0.0
    %469 = vmatpush1.msra.mxu0 %v83
    %470 = vmatprep.subr.mxu0 0.0
    %471 = vmatpush1.msra.mxu0 %v84
    %472 = vmatprep.subr.mxu0 0.0
    %473 = vmatpush1.msra.mxu0 %v85
    %474 = vmatprep.subr.mxu0 0.0
    %475 = vmatpush1.msra.mxu0 %v86
    %476 = vmatprep.subr.mxu0 0.0
    %477 = vmatpush1.msra.mxu0 %v87
    %478 = vmatprep.subr.mxu0 0.0
    %479 = vmatpush1.msra.mxu0 %v88
    %480 = vmatprep.subr.mxu0 0.0
    %481 = vmatpush1.msra.mxu0 %v89
    %482 = vmatprep.subr.mxu0 0.0
    %483 = vmatpush1.msra.mxu0 %v90
    %484 = vmatprep.subr.mxu0 0.0
    %485 = vmatpush1.msra.mxu0 %v91
    %486 = vmatprep.subr.mxu0 0.0
    %487 = vmatpush1.msra.mxu0 %v92
    %488 = vmatprep.subr.mxu0 0.0
    %489 = vmatpush1.msra.mxu0 %v93
    %490 = vmatprep.subr.mxu0 0.0
    %491 = vmatpush1.msra.mxu0 %v94
    %492 = vmatprep.subr.mxu0 0.0
    %493 = vmatpush1.msra.mxu0 %v95
    %494 = vmatprep.subr.mxu0 0.0
    %495 = vmatpush1.msra.mxu0 %v96
    %496 = vmatprep.subr.mxu0 0.0
    %497 = vmatpush1.msra.mxu0 %v97
    %498 = vmatprep.subr.mxu0 0.0
    %499 = vmatpush1.msra.mxu0 %v98
    %500 = vmatprep.subr.mxu0 0.0
    %501 = vmatpush1.msra.mxu0 %v99
    %502 = vmatprep.subr.mxu0 0.0
    %503 = vmatpush1.msra.mxu0 %v100
    %504 = vmatprep.subr.mxu0 0.0
    %505 = vmatpush1.msra.mxu0 %v101
    %506 = vmatprep.subr.mxu0 0.0
    %507 = vmatpush1.msra.mxu0 %v102
    %508 = vmatprep.subr.mxu0 0.0
    %509 = vmatpush1.msra.mxu0 %v103
    %510 = vmatprep.subr.mxu0 0.0
    %511 = vmatpush1.msra.mxu0 %v104
    %512 = vmatprep.subr.mxu0 0.0
    %513 = vmatpush1.msra.mxu0 %v105
    %514 = vmatprep.subr.mxu0 0.0
    %515 = vmatpush1.msra.mxu0 %v106
    %516 = vmatprep.subr.mxu0 0.0
    %517 = vmatpush1.msra.mxu0 %v107
    %518 = vmatprep.mubr.f32.mxu0 %v319
    %519 = vmatmul.mubr.f32.gmra.mrb[0].mxu0 %v315
    %v520 = vpop.f32.mrb[0].mxu0
    %v521 = vadd.f32 %v451, %v520
    %v522 = vpop.f32.mrb[0].mxu0
    %523 = vdwg.mxu0
    %524 = vmatprep.subr.mxu0 0.0
    %525 = vmatpush1.msra.mxu0 %v108
    %526 = vmatprep.subr.mxu0 0.0
    %527 = vmatpush1.msra.mxu0 %v109
    %528 = vmatprep.subr.mxu0 0.0
    %529 = vmatpush1.msra.mxu0 %v110
    %530 = vmatprep.subr.mxu0 0.0
    %531 = vmatpush1.msra.mxu0 %v111
    %532 = vmatprep.subr.mxu0 0.0
    %533 = vmatpush1.msra.mxu0 %v112
    %534 = vmatprep.subr.mxu0 0.0
    %535 = vmatpush1.msra.mxu0 %v113
    %536 = vmatprep.subr.mxu0 0.0
    %537 = vmatpush1.msra.mxu0 %v114
    %538 = vmatprep.subr.mxu0 0.0
    %539 = vmatpush1.msra.mxu0 %v115
    %540 = vmatprep.subr.mxu0 0.0
    %541 = vmatpush1.msra.mxu0 %v116
    %542 = vmatprep.subr.mxu0 0.0
    %543 = vmatpush1.msra.mxu0 %v117
    %544 = vmatprep.subr.mxu0 0.0
    %545 = vmatpush1.msra.mxu0 %v118
    %546 = vmatprep.subr.mxu0 0.0
    %547 = vmatpush1.msra.mxu0 %v119
    %548 = vmatprep.subr.mxu0 0.0
    %549 = vmatpush1.msra.mxu0 %v120
    %550 = vmatprep.subr.mxu0 0.0
    %551 = vmatpush1.msra.mxu0 %v121
    %552 = vmatprep.subr.mxu0 0.0
    %553 = vmatpush1.msra.mxu0 %v122
    %554 = vmatprep.subr.mxu0 0.0
    %555 = vmatpush1.msra.mxu0 %v123
    %556 = vmatprep.subr.mxu0 0.0
    %557 = vmatpush1.msra.mxu0 %v124
    %558 = vmatprep.subr.mxu0 0.0
    %559 = vmatpush1.msra.mxu0 %v125
    %560 = vmatprep.subr.mxu0 0.0
    %561 = vmatpush1.msra.mxu0 %v126
    %562 = vmatprep.subr.mxu0 0.0
    %563 = vmatpush1.msra.mxu0 %v127
    %564 = vmatprep.subr.mxu0 0.0
    %565 = vmatpush1.msra.mxu0 %v128
    %566 = vmatprep.subr.mxu0 0.0
    %567 = vmatpush1.msra.mxu0 %v129
    %568 = vmatprep.subr.mxu0 0.0
    %569 = vmatpush1.msra.mxu0 %v130
    %570 = vmatprep.subr.mxu0 0.0
    %571 = vmatpush1.msra.mxu0 %v131
    %572 = vmatprep.subr.mxu0 0.0
    %573 = vmatpush1.msra.mxu0 %v132
    %574 = vmatprep.subr.mxu0 0.0
    %575 = vmatpush1.msra.mxu0 %v133
    %576 = vmatprep.subr.mxu0 0.0
    %577 = vmatpush1.msra.mxu0 %v134
    %578 = vmatprep.subr.mxu0 0.0
    %579 = vmatpush1.msra.mxu0 %v135
    %580 = vmatprep.subr.mxu0 0.0
    %581 = vmatpush1.msra.mxu0 %v136
    %582 = vmatprep.subr.mxu0 0.0
    %583 = vmatpush1.msra.mxu0 %v137
    %584 = vmatprep.subr.mxu0 0.0
    %585 = vmatpush1.msra.mxu0 %v138
    %586 = vmatprep.subr.mxu0 0.0
    %587 = vmatpush1.msra.mxu0 %v139
    %588 = vmatprep.mubr.f32.mxu0 %v327
    %589 = vmatmul.mubr.f32.gmra.mrb[0].mxu0 %v323
    %v590 = vpop.f32.mrb[0].mxu0
    %v591 = vadd.f32 %v521, %v590
    %v592 = vpop.f32.mrb[0].mxu0
    %593 = vdwg.mxu0
    %594 = vmatprep.subr.mxu0 0.0
    %595 = vmatpush1.msra.mxu0 %v140
    %596 = vmatprep.subr.mxu0 0.0
    %597 = vmatpush1.msra.mxu0 %v141
    %598 = vmatprep.subr.mxu0 0.0
    %599 = vmatpush1.msra.mxu0 %v142
    %600 = vmatprep.subr.mxu0 0.0
    %601 = vmatpush1.msra.mxu0 %v143
    %602 = vmatprep.subr.mxu0 0.0
    %603 = vmatpush1.msra.mxu0 %v144
    %604 = vmatprep.subr.mxu0 0.0
    %605 = vmatpush1.msra.mxu0 %v145
    %606 = vmatprep.subr.mxu0 0.0
    %607 = vmatpush1.msra.mxu0 %v146
    %608 = vmatprep.subr.mxu0 0.0
    %609 = vmatpush1.msra.mxu0 %v147
    %610 = vmatprep.subr.mxu0 0.0
    %611 = vmatpush1.msra.mxu0 %v148
    %612 = vmatprep.subr.mxu0 0.0
    %613 = vmatpush1.msra.mxu0 %v149
    %614 = vmatprep.subr.mxu0 0.0
    %615 = vmatpush1.msra.mxu0 %v150
    %616 = vmatprep.subr.mxu0 0.0
    %617 = vmatpush1.msra.mxu0 %v151
    %618 = vmatprep.subr.mxu0 0.0
    %619 = vmatpush1.msra.mxu0 %v152
    %620 = vmatprep.subr.mxu0 0.0
    %621 = vmatpush1.msra.mxu0 %v153
    %622 = vmatprep.subr.mxu0 0.0
    %623 = vmatpush1.msra.mxu0 %v154
    %624 = vmatprep.subr.mxu0 0.0
    %625 = vmatpush1.msra.mxu0 %v155
    %626 = vmatprep.subr.mxu0 0.0
    %627 = vmatpush1.msra.mxu0 %v156
    %628 = vmatprep.subr.mxu0 0.0
    %629 = vmatpush1.msra.mxu0 %v157
    %630 = vmatprep.subr.mxu0 0.0
    %631 = vmatpush1.msra.mxu0 %v158
    %632 = vmatprep.subr.mxu0 0.0
    %633 = vmatpush1.msra.mxu0 %v159
    %634 = vmatprep.subr.mxu0 0.0
    %635 = vmatpush1.msra.mxu0 %v160
    %636 = vmatprep.subr.mxu0 0.0
    %637 = vmatpush1.msra.mxu0 %v161
    %638 = vmatprep.subr.mxu0 0.0
    %639 = vmatpush1.msra.mxu0 %v162
    %640 = vmatprep.subr.mxu0 0.0
    %641 = vmatpush1.msra.mxu0 %v163
    %642 = vmatprep.subr.mxu0 0.0
    %643 = vmatpush1.msra.mxu0 %v164
    %644 = vmatprep.subr.mxu0 0.0
    %645 = vmatpush1.msra.mxu0 %v165
    %646 = vmatprep.subr.mxu0 0.0
    %647 = vmatpush1.msra.mxu0 %v166
    %648 = vmatprep.subr.mxu0 0.0
    %649 = vmatpush1.msra.mxu0 %v167
    %650 = vmatprep.subr.mxu0 0.0
    %651 = vmatpush1.msra.mxu0 %v168
    %652 = vmatprep.subr.mxu0 0.0
    %653 = vmatpush1.msra.mxu0 %v169
    %654 = vmatprep.subr.mxu0 0.0
    %655 = vmatpush1.msra.mxu0 %v170
    %656 = vmatprep.subr.mxu0 0.0
    %657 = vmatpush1.msra.mxu0 %v171
    %658 = vmatprep.mubr.f32.mxu0 %v335
    %659 = vmatmul.mubr.f32.gmra.mrb[0].mxu0 %v331
    %v660 = vpop.f32.mrb[0].mxu0
    %v661 = vadd.f32 %v591, %v660
    %v662 = vpop.f32.mrb[0].mxu0
    %663 = vdwg.mxu0
    %664 = vmatprep.subr.mxu0 0.0
    %665 = vmatpush1.msra.mxu0 %v172
    %666 = vmatprep.subr.mxu0 0.0
    %667 = vmatpush1.msra.mxu0 %v173
    %668 = vmatprep.subr.mxu0 0.0
    %669 = vmatpush1.msra.mxu0 %v174
    %670 = vmatprep.subr.mxu0 0.0
    %671 = vmatpush1.msra.mxu0 %v175
    %672 = vmatprep.subr.mxu0 0.0
    %673 = vmatpush1.msra.mxu0 %v176
    %674 = vmatprep.subr.mxu0 0.0
    %675 = vmatpush1.msra.mxu0 %v177
    %676 = vmatprep.subr.mxu0 0.0
    %677 = vmatpush1.msra.mxu0 %v178
    %678 = vmatprep.subr.mxu0 0.0
    %679 = vmatpush1.msra.mxu0 %v179
    %680 = vmatprep.subr.mxu0 0.0
    %681 = vmatpush1.msra.mxu0 %v180
    %682 = vmatprep.subr.mxu0 0.0
    %683 = vmatpush1.msra.mxu0 %v181
    %684 = vmatprep.subr.mxu0 0.0
    %685 = vmatpush1.msra.mxu0 %v182
    %686 = vmatprep.subr.mxu0 0.0
    %687 = vmatpush1.msra.mxu0 %v183
    %688 = vmatprep.subr.mxu0 0.0
    %689 = vmatpush1.msra.mxu0 %v184
    %690 = vmatprep.subr.mxu0 0.0
    %691 = vmatpush1.msra.mxu0 %v185
    %692 = vmatprep.subr.mxu0 0.0
    %693 = vmatpush1.msra.mxu0 %v186
    %694 = vmatprep.subr.mxu0 0.0
    %695 = vmatpush1.msra.mxu0 %v187
    %696 = vmatprep.subr.mxu0 0.0
    %697 = vmatpush1.msra.mxu0 %v188
    %698 = vmatprep.subr.mxu0 0.0
    %699 = vmatpush1.msra.mxu0 %v189
    %700 = vmatprep.subr.mxu0 0.0
    %701 = vmatpush1.msra.mxu0 %v190
    %702 = vmatprep.subr.mxu0 0.0
    %703 = vmatpush1.msra.mxu0 %v191
    %704 = vmatprep.subr.mxu0 0.0
    %705 = vmatpush1.msra.mxu0 %v192
    %706 = vmatprep.subr.mxu0 0.0
    %707 = vmatpush1.msra.mxu0 %v193
    %708 = vmatprep.subr.mxu0 0.0
    %709 = vmatpush1.msra.mxu0 %v194
    %710 = vmatprep.subr.mxu0 0.0
    %711 = vmatpush1.msra.mxu0 %v195
    %712 = vmatprep.subr.mxu0 0.0
    %713 = vmatpush1.msra.mxu0 %v196
    %714 = vmatprep.subr.mxu0 0.0
    %715 = vmatpush1.msra.mxu0 %v197
    %716 = vmatprep.subr.mxu0 0.0
    %717 = vmatpush1.msra.mxu0 %v198
    %718 = vmatprep.subr.mxu0 0.0
    %719 = vmatpush1.msra.mxu0 %v199
    %720 = vmatprep.subr.mxu0 0.0
    %721 = vmatpush1.msra.mxu0 %v200
    %722 = vmatprep.subr.mxu0 0.0
    %723 = vmatpush1.msra.mxu0 %v201
    %724 = vmatprep.subr.mxu0 0.0
    %725 = vmatpush1.msra.mxu0 %v202
    %726 = vmatprep.subr.mxu0 0.0
    %727 = vmatpush1.msra.mxu0 %v203
    %728 = vmatprep.mubr.f32.mxu0 %v343
    %729 = vmatmul.mubr.f32.gmra.mrb[0].mxu0 %v339
    %v730 = vpop.f32.mrb[0].mxu0
    %v731 = vadd.f32 %v661, %v730
    %v732 = vpop.f32.mrb[0].mxu0
    %733 = vdwg.mxu0
    %734 = vmatprep.subr.mxu0 0.0
    %735 = vmatpush1.msra.mxu0 %v204
    %736 = vmatprep.subr.mxu0 0.0
    %737 = vmatpush1.msra.mxu0 %v205
    %738 = vmatprep.subr.mxu0 0.0
    %739 = vmatpush1.msra.mxu0 %v206
    %740 = vmatprep.subr.mxu0 0.0
    %741 = vmatpush1.msra.mxu0 %v207
    %742 = vmatprep.subr.mxu0 0.0
    %743 = vmatpush1.msra.mxu0 %v208
    %744 = vmatprep.subr.mxu0 0.0
    %745 = vmatpush1.msra.mxu0 %v209
    %746 = vmatprep.subr.mxu0 0.0
    %747 = vmatpush1.msra.mxu0 %v210
    %748 = vmatprep.subr.mxu0 0.0
    %749 = vmatpush1.msra.mxu0 %v211
    %750 = vmatprep.subr.mxu0 0.0
    %751 = vmatpush1.msra.mxu0 %v212
    %752 = vmatprep.subr.mxu0 0.0
    %753 = vmatpush1.msra.mxu0 %v213
    %754 = vmatprep.subr.mxu0 0.0
    %755 = vmatpush1.msra.mxu0 %v214
    %756 = vmatprep.subr.mxu0 0.0
    %757 = vmatpush1.msra.mxu0 %v215
    %758 = vmatprep.subr.mxu0 0.0
    %759 = vmatpush1.msra.mxu0 %v216
    %760 = vmatprep.subr.mxu0 0.0
    %761 = vmatpush1.msra.mxu0 %v217
    %762 = vmatprep.subr.mxu0 0.0
    %763 = vmatpush1.msra.mxu0 %v218
    %764 = vmatprep.subr.mxu0 0.0
    %765 = vmatpush1.msra.mxu0 %v219
    %766 = vmatprep.subr.mxu0 0.0
    %767 = vmatpush1.msra.mxu0 %v220
    %768 = vmatprep.subr.mxu0 0.0
    %769 = vmatpush1.msra.mxu0 %v221
    %770 = vmatprep.subr.mxu0 0.0
    %771 = vmatpush1.msra.mxu0 %v222
    %772 = vmatprep.subr.mxu0 0.0
    %773 = vmatpush1.msra.mxu0 %v223
    %774 = vmatprep.subr.mxu0 0.0
    %775 = vmatpush1.msra.mxu0 %v224
    %776 = vmatprep.subr.mxu0 0.0
    %777 = vmatpush1.msra.mxu0 %v225
    %778 = vmatprep.subr.mxu0 0.0
    %779 = vmatpush1.msra.mxu0 %v226
    %780 = vmatprep.subr.mxu0 0.0
    %781 = vmatpush1.msra.mxu0 %v227
    %782 = vmatprep.subr.mxu0 0.0
    %783 = vmatpush1.msra.mxu0 %v228
    %784 = vmatprep.subr.mxu0 0.0
    %785 = vmatpush1.msra.mxu0 %v229
    %786 = vmatprep.subr.mxu0 0.0
    %787 = vmatpush1.msra.mxu0 %v230
    %788 = vmatprep.subr.mxu0 0.0
    %789 = vmatpush1.msra.mxu0 %v231
    %790 = vmatprep.subr.mxu0 0.0
    %791 = vmatpush1.msra.mxu0 %v232
    %792 = vmatprep.subr.mxu0 0.0
    %793 = vmatpush1.msra.mxu0 %v233
    %794 = vmatprep.subr.mxu0 0.0
    %795 = vmatpush1.msra.mxu0 %v234
    %796 = vmatprep.subr.mxu0 0.0
    %797 = vmatpush1.msra.mxu0 %v235
    %798 = vmatprep.mubr.f32.mxu0 %v351
    %799 = vmatmul.mubr.f32.gmra.mrb[0].mxu0 %v347
    %v800 = vpop.f32.mrb[0].mxu0
    %v801 = vadd.f32 %v731, %v800
    %v802 = vpop.f32.mrb[0].mxu0
    %803 = vdwg.mxu0
    %804 = vmatprep.subr.mxu0 0.0
    %805 = vmatpush1.msra.mxu0 %v236
    %806 = vmatprep.subr.mxu0 0.0
    %807 = vmatpush1.msra.mxu0 %v237
    %808 = vmatprep.subr.mxu0 0.0
    %809 = vmatpush1.msra.mxu0 %v238
    %810 = vmatprep.subr.mxu0 0.0
    %811 = vmatpush1.msra.mxu0 %v239
    %812 = vmatprep.subr.mxu0 0.0
    %813 = vmatpush1.msra.mxu0 %v240
    %814 = vmatprep.subr.mxu0 0.0
    %815 = vmatpush1.msra.mxu0 %v241
    %816 = vmatprep.subr.mxu0 0.0
    %817 = vmatpush1.msra.mxu0 %v242
    %818 = vmatprep.subr.mxu0 0.0
    %819 = vmatpush1.msra.mxu0 %v243
    %820 = vmatprep.subr.mxu0 0.0
    %821 = vmatpush1.msra.mxu0 %v244
    %822 = vmatprep.subr.mxu0 0.0
    %823 = vmatpush1.msra.mxu0 %v245
    %824 = vmatprep.subr.mxu0 0.0
    %825 = vmatpush1.msra.mxu0 %v246
    %826 = vmatprep.subr.mxu0 0.0
    %827 = vmatpush1.msra.mxu0 %v247
    %828 = vmatprep.subr.mxu0 0.0
    %829 = vmatpush1.msra.mxu0 %v248
    %830 = vmatprep.subr.mxu0 0.0
    %831 = vmatpush1.msra.mxu0 %v249
    %832 = vmatprep.subr.mxu0 0.0
    %833 = vmatpush1.msra.mxu0 %v250
    %834 = vmatprep.subr.mxu0 0.0
    %835 = vmatpush1.msra.mxu0 %v251
    %836 = vmatprep.subr.mxu0 0.0
    %837 = vmatpush1.msra.mxu0 %v252
    %838 = vmatprep.subr.mxu0 0.0
    %839 = vmatpush1.msra.mxu0 %v253
    %840 = vmatprep.subr.mxu0 0.0
    %841 = vmatpush1.msra.mxu0 %v254
    %842 = vmatprep.subr.mxu0 0.0
    %843 = vmatpush1.msra.mxu0 %v255
    %844 = vmatprep.subr.mxu0 0.0
    %845 = vmatpush1.msra.mxu0 %v256
    %846 = vmatprep.subr.mxu0 0.0
    %847 = vmatpush1.msra.mxu0 %v257
    %848 = vmatprep.subr.mxu0 0.0
    %849 = vmatpush1.msra.mxu0 %v258
    %850 = vmatprep.subr.mxu0 0.0
    %851 = vmatpush1.msra.mxu0 %v259
    %852 = vmatprep.subr.mxu0 0.0
    %853 = vmatpush1.msra.mxu0 %v260
    %854 = vmatprep.subr.mxu0 0.0
    %855 = vmatpush1.msra.mxu0 %v261
    %856 = vmatprep.subr.mxu0 0.0
    %857 = vmatpush1.msra.mxu0 %v262
    %858 = vmatprep.subr.mxu0 0.0
    %859 = vmatpush1.msra.mxu0 %v263
    %860 = vmatprep.subr.mxu0 0.0
    %861 = vmatpush1.msra.mxu0 %v264
    %862 = vmatprep.subr.mxu0 0.0
    %863 = vmatpush1.msra.mxu0 %v265
    %864 = vmatprep.subr.mxu0 0.0
    %865 = vmatpush1.msra.mxu0 %v266
    %866 = vmatprep.subr.mxu0 0.0
    %867 = vmatpush1.msra.mxu0 %v267
    %868 = vmatprep.mubr.f32.mxu0 %v359
    %869 = vmatmul.mubr.f32.gmra.mrb[0].mxu0 %v355
    %v870 = vpop.f32.mrb[0].mxu0
    %v871 = vadd.f32 %v801, %v870
    %v872 = vpop.f32.mrb[0].mxu0
    %873 = vdwg.mxu0
    %874 = vmatprep.subr.mxu0 0.0
    %875 = vmatpush1.msra.mxu0 %v268
    %876 = vmatprep.subr.mxu0 0.0
    %877 = vmatpush1.msra.mxu0 %v269
    %878 = vmatprep.subr.mxu0 0.0
    %879 = vmatpush1.msra.mxu0 %v270
    %880 = vmatprep.subr.mxu0 0.0
    %881 = vmatpush1.msra.mxu0 %v271
    %882 = vmatprep.subr.mxu0 0.0
    %883 = vmatpush1.msra.mxu0 %v272
    %884 = vmatprep.subr.mxu0 0.0
    %885 = vmatpush1.msra.mxu0 %v273
    %886 = vmatprep.subr.mxu0 0.0
    %887 = vmatpush1.msra.mxu0 %v274
    %888 = vmatprep.subr.mxu0 0.0
    %889 = vmatpush1.msra.mxu0 %v275
    %890 = vmatprep.subr.mxu0 0.0
    %891 = vmatpush1.msra.mxu0 %v276
    %892 = vmatprep.subr.mxu0 0.0
    %893 = vmatpush1.msra.mxu0 %v277
    %894 = vmatprep.subr.mxu0 0.0
    %895 = vmatpush1.msra.mxu0 %v278
    %896 = vmatprep.subr.mxu0 0.0
    %897 = vmatpush1.msra.mxu0 %v279
    %898 = vmatprep.subr.mxu0 0.0
    %899 = vmatpush1.msra.mxu0 %v280
    %900 = vmatprep.subr.mxu0 0.0
    %901 = vmatpush1.msra.mxu0 %v281
    %902 = vmatprep.subr.mxu0 0.0
    %903 = vmatpush1.msra.mxu0 %v282
    %904 = vmatprep.subr.mxu0 0.0
    %905 = vmatpush1.msra.mxu0 %v283
    %906 = vmatprep.subr.mxu0 0.0
    %907 = vmatpush1.msra.mxu0 %v284
    %908 = vmatprep.subr.mxu0 0.0
    %909 = vmatpush1.msra.mxu0 %v285
    %910 = vmatprep.subr.mxu0 0.0
    %911 = vmatpush1.msra.mxu0 %v286
    %912 = vmatprep.subr.mxu0 0.0
    %913 = vmatpush1.msra.mxu0 %v287
    %914 = vmatprep.subr.mxu0 0.0
    %915 = vmatpush1.msra.mxu0 %v288
    %916 = vmatprep.subr.mxu0 0.0
    %917 = vmatpush1.msra.mxu0 %v289
    %918 = vmatprep.subr.mxu0 0.0
    %919 = vmatpush1.msra.mxu0 %v290
    %920 = vmatprep.subr.mxu0 0.0
    %921 = vmatpush1.msra.mxu0 %v291
    %922 = vmatprep.subr.mxu0 0.0
    %923 = vmatpush1.msra.mxu0 %v292
    %924 = vmatprep.subr.mxu0 0.0
    %925 = vmatpush1.msra.mxu0 %v293
    %926 = vmatprep.subr.mxu0 0.0
    %927 = vmatpush1.msra.mxu0 %v294
    %928 = vmatprep.subr.mxu0 0.0
    %929 = vmatpush1.msra.mxu0 %v295
    %930 = vmatprep.subr.mxu0 0.0
    %931 = vmatpush1.msra.mxu0 %v296
    %932 = vmatprep.subr.mxu0 0.0
    %933 = vmatpush1.msra.mxu0 %v297
    %934 = vmatprep.subr.mxu0 0.0
    %935 = vmatpush1.msra.mxu0 %v298
    %936 = vmatprep.subr.mxu0 0.0
    %937 = vmatpush1.msra.mxu0 %v299
    %938 = vmatprep.mubr.f32.mxu0 %v367
    %939 = vmatmul.mubr.f32.gmra.mrb[0].mxu0 %v363
    %v940 = vpop.f32.mrb[0].mxu0
    %v941 = vadd.f32 %v871, %v940
    %v942 = vpop.f32.mrb[0].mxu0
    %943 = vdwg.mxu0
    %944 = vst [vmem:[#allocation8] sm:$0x1] %v941
    // Predicated region
    $region22: #{tpu_custom_call.1} parent=1 // pred_check
      _
    $region23: #{tpu_custom_call.1} parent=1 // pred_check_branch
      %946 = sbr.rel (0) target = $region25
    $region24: #{tpu_custom_call.1} parent=1 // pred_region
      %s948 = ssub.s32 16, 16
      %949 = vsyncadd [#allocation5], %s948
      %s951 = sshll.u32 [#allocation8], 4
      %s952 = int_to_ptr.vmem [resolvable:$true] %s951
      %954 = dma.vmem_to_hbm [thread:$0]  %s952, 16, %s3, [#allocation5]
    $region25: #{tpu_custom_call.1} parent=1 // pred_fallthru
      _
    // Predicated region
    $region26: #{tpu_custom_call.1} parent=1 // pred_check
      _
    $region27: #{tpu_custom_call.1} parent=1 // pred_check_branch
      %956 = sbr.rel (0) target = $region29
    $region28: #{tpu_custom_call.1} parent=1 // pred_region
      %957 = dma.done [#allocation5], 16
    $region29: #{tpu_custom_call.1} parent=1 // pred_fallthru
      _
    %958 = vsyncpa [#allocation4], 1
    %959 = vsyncpa [#allocation7], 1
    %960 = vsyncpa [#allocation5], 1

</llo_original>
